<compile_context>
chip_gen: v7x
topology: tpu7x:2x2x1
jax: 0.10.0
libtpu: 0.0.40
codegen_flags: <defaults>
</compile_context>

<pallas_src>
import jax
import jax.numpy as jnp
from jax.experimental import pallas as pl
from jax.experimental.pallas import tpu as pltpu

_LANES = 128
_NEG_BIG = -1e30  # "minus infinity" that stays NaN-safe under 0 * x


def _round_up(x, m):
    return ((x + m - 1) // m) * m


def glc_kernel(logits_ref, labels_ref, cw_ref, nw_ref, t_ref, out_ref):
    logits = logits_ref[...]           # [TN, Cp] f32
    labels = labels_ref[...]           # [TN, 1]  i32
    cw = cw_ref[...]                   # [TN, 1]  f32  (mask * valid)
    nw = nw_ref[...]                   # [TN, 1]  f32  ((1-mask) * valid)
    t_mat = t_ref[...]                 # [Cp, Cp] f32  (resident across the grid)

    tn, cp = logits.shape

    # one-hot(y) via iota compare (no gather)
    class_ids = jax.lax.broadcasted_iota(jnp.int32, (tn, cp), 1)
    onehot = (class_ids == labels).astype(jnp.float32)            # [TN, Cp]

    # numerically-stable softmax pieces
    m = jnp.max(logits, axis=-1, keepdims=True)
    z = logits - m
    e = jnp.exp(z)                                                 # padded cols -> 0
    s = jnp.sum(e, axis=-1, keepdims=True)
    log_s = jnp.log(s)                                             # [TN, 1]

    # per-sample cross-entropy:  -log_softmax[i, y_i] = log_s - z[i, y_i]
    z_y = jnp.sum(onehot * z, axis=-1, keepdims=True)              # [TN, 1]
    ce = log_s - z_y                                               # [TN, 1]

    # corrected-label NLL:  softmax @ T == (e @ T) / s, so
    #   -log((softmax @ T)[i, y_i]) = log_s - log((e @ T)[i, y_i])
    corrected_unnorm = jnp.dot(e, t_mat, preferred_element_type=jnp.float32)  # MXU
    picked = jnp.sum(onehot * corrected_unnorm, axis=-1, keepdims=True)       # [TN, 1]
    nll = log_s - jnp.log(picked)                                  # [TN, 1]

    # per-row weighted loss; guard so zero-weight (incl. padded) rows give 0
    per_row = ce * cw + jnp.where(nw > 0.0, nll * nw, 0.0)         # [TN, 1]
    partial = jnp.sum(per_row)                                     # scalar

    # lane-dense, unmasked store of this tile's partial sum
    out_ref[...] = jnp.full((1, _LANES), partial, dtype=jnp.float32)


def _auto_tile_n(n, c_pad):
    # target ~4 MiB per logits buffer (x2 for double-buffering); multiple of 8
    rows = (4 * 1024 * 1024) // (c_pad * 4)
    rows = max(8, min(1024, rows))
    rows = (rows // 8) * 8
    return min(rows, _round_up(n, 8))


def gold_correction_loss(logits, labels, mask, label_correction_matrix, tile_n=None):
    n, c = logits.shape
    c_pad = _round_up(c, _LANES)

    if tile_n is None:
        tile_n = _auto_tile_n(n, c_pad)
    tile_n = max(8, _round_up(tile_n, 8))
    n_pad = _round_up(n, tile_n)
    num_tiles = pl.cdiv(n_pad, tile_n)

    # ---- host-side padding to lane-dense / tile-aligned shapes ----
    logits_p = jnp.full((n_pad, c_pad), _NEG_BIG, dtype=jnp.float32)
    logits_p = logits_p.at[:n, :c].set(logits.astype(jnp.float32))

    labels_p = jnp.zeros((n_pad, 1), dtype=jnp.int32)
    labels_p = labels_p.at[:n, 0].set(labels.astype(jnp.int32))

    valid = jnp.zeros((n_pad, 1), dtype=jnp.float32).at[:n, 0].set(1.0)
    mask_p = jnp.zeros((n_pad, 1), dtype=jnp.float32)
    mask_p = mask_p.at[:n, 0].set(mask.astype(jnp.float32))
    cw = mask_p * valid                # weight for CE term
    nw = (1.0 - mask_p) * valid        # weight for corrected-NLL term

    t_p = jnp.zeros((c_pad, c_pad), dtype=jnp.float32)
    t_p = t_p.at[:c, :c].set(label_correction_matrix.astype(jnp.float32))

    # VMEM budget: double-buffered tile inputs + resident T, with headroom.
    resident_bytes = c_pad * c_pad * 4
    per_tile_bytes = tile_n * (c_pad + 3) * 4 + _LANES * 4
    vmem_limit = int(min(max(4 * (resident_bytes + 2 * per_tile_bytes),
                             32 * 1024 * 1024),
                         64 * 1024 * 1024))

    cost = pl.CostEstimate(
        flops=2 * n_pad * c_pad * c_pad,
        transcendentals=n_pad * c_pad + 3 * n_pad,
        bytes_accessed=4 * (n_pad * c_pad + c_pad * c_pad + 3 * n_pad
                            + num_tiles * _LANES),
    )

    partials = pl.pallas_call(
        glc_kernel,
        out_shape=jax.ShapeDtypeStruct((1, num_tiles * _LANES), jnp.float32),
        grid=(num_tiles,),
        in_specs=[
            pl.BlockSpec((tile_n, c_pad), lambda i: (i, 0)),   # logits tile
            pl.BlockSpec((tile_n, 1), lambda i: (i, 0)),       # labels tile
            pl.BlockSpec((tile_n, 1), lambda i: (i, 0)),       # cw tile
            pl.BlockSpec((tile_n, 1), lambda i: (i, 0)),       # nw tile
            pl.BlockSpec((c_pad, c_pad), lambda i: (0, 0)),    # T (resident)
        ],
        out_specs=pl.BlockSpec((1, _LANES), lambda i: (0, i)), # lane-dense partials
        compiler_params=pltpu.CompilerParams(
            dimension_semantics=("parallel",),
            vmem_limit_bytes=vmem_limit,
        ),
        cost_estimate=cost,
    )(logits_p, labels_p, cw, nw, t_p)

    # each tile broadcasts its partial across its 128 lanes -> take lane 0
    per_tile = partials.reshape(num_tiles, _LANES)[:, 0]
    return jnp.sum(per_tile) / jnp.float32(n)


def _reference(logits, labels, mask, t_mat):
    # pure-JAX reference for sanity checking
    log_sm = jax.nn.log_softmax(logits, axis=1)
    ce = -jnp.take_along_axis(log_sm, labels[:, None], axis=1)[:, 0]
    corrected = jnp.log(jax.nn.softmax(logits, axis=1) @ t_mat)
    nll = -jnp.take_along_axis(corrected, labels[:, None], axis=1)[:, 0]
    return (ce * mask).mean() + (nll * (1.0 - mask)).mean()


if __name__ == "__main__":
    key = jax.random.PRNGKey(0)
    k1, k2, k3, k4 = jax.random.split(key, 4)

    N, C = 32, 16  # small demo: 32 samples, 16 classes

    logits = jax.random.normal(k1, (N, C), dtype=jnp.float32)
    labels = jax.random.randint(k2, (N,), 0, C, dtype=jnp.int32)
    mask = jax.random.bernoulli(k3, 0.5, (N,)).astype(jnp.float32)

    # row-stochastic label-correction matrix
    raw_t = jax.random.normal(k4, (C, C), dtype=jnp.float32)
    label_correction_matrix = jax.nn.softmax(raw_t, axis=1)

    # tile_n=16 -> 2 grid tiles, exercising the batch grid / parallel axis
    loss = gold_correction_loss(logits, labels, mask, label_correction_matrix,
                                tile_n=16)
    jax.block_until_ready(loss)

    ref = _reference(logits, labels, mask, label_correction_matrix)
    assert jnp.allclose(loss, ref, atol=1e-4, rtol=1e-4), (loss, ref)

    print("KERNEL_OK")
</pallas_src>

<mosaic_0001>
module attributes {stable_mosaic.version = 11 : i64} {
  func.func @glc_kernel(%arg0: i32, %arg1: memref<16x128xf32, #tpu.memory_space<vmem>>, %arg2: memref<16x1xi32, #tpu.memory_space<vmem>>, %arg3: memref<16x1xf32, #tpu.memory_space<vmem>>, %arg4: memref<16x1xf32, #tpu.memory_space<vmem>>, %arg5: memref<128x128xf32, #tpu.memory_space<vmem>>, %arg6: memref<1x128xf32, #tpu.memory_space<vmem>>) attributes {dimension_semantics = [#tpu.dimension_semantics<parallel>], iteration_bounds = array<i64: 2>, scalar_prefetch = 0 : i64, scratch_operands = 0 : i64, tpu.core_type = #tpu.core_type<tc>, window_params = [{transform_indices = @transform_0, window_bounds = array<i64: 16, 128>}, {transform_indices = @transform_1, window_bounds = array<i64: 16, 1>}, {transform_indices = @transform_2, window_bounds = array<i64: 16, 1>}, {transform_indices = @transform_3, window_bounds = array<i64: 16, 1>}, {pipeline_mode = #tpu.pipeline_mode<synchronous>, transform_indices = @transform_4, window_bounds = array<i64: 128, 128>}, {transform_indices = @transform_5, window_bounds = array<i64: 1, 128>}]} {
    %c0 = arith.constant 0 : index
    %c0_0 = arith.constant 0 : index
    %0 = vector.load %arg1[%c0, %c0_0] : memref<16x128xf32, #tpu.memory_space<vmem>>, vector<16x128xf32>
    %c0_1 = arith.constant 0 : index
    %c0_2 = arith.constant 0 : index
    %1 = vector.load %arg2[%c0_1, %c0_2] : memref<16x1xi32, #tpu.memory_space<vmem>>, vector<16x1xi32>
    %c0_3 = arith.constant 0 : index
    %c0_4 = arith.constant 0 : index
    %2 = vector.load %arg3[%c0_3, %c0_4] : memref<16x1xf32, #tpu.memory_space<vmem>>, vector<16x1xf32>
    %c0_5 = arith.constant 0 : index
    %c0_6 = arith.constant 0 : index
    %3 = vector.load %arg4[%c0_5, %c0_6] : memref<16x1xf32, #tpu.memory_space<vmem>>, vector<16x1xf32>
    %c0_7 = arith.constant 0 : index
    %c0_8 = arith.constant 0 : index
    %4 = vector.load %arg5[%c0_7, %c0_8] : memref<128x128xf32, #tpu.memory_space<vmem>>, vector<128x128xf32>
    %5 = tpu.iota {dimensions = array<i32: 1>} : vector<16x128xi32>
    %6 = vector.broadcast %1 : vector<16x1xi32> to vector<16x128xi32>
    %7 = arith.cmpi eq, %5, %6 : vector<16x128xi32>
    %8 = arith.extui %7 : vector<16x128xi1> to vector<16x128xi32>
    %9 = arith.sitofp %8 : vector<16x128xi32> to vector<16x128xf32>
    %cst = arith.constant dense<0xFF800000> : vector<16xf32>
    %10 = vector.multi_reduction <maximumf>, %0, %cst [1] : vector<16x128xf32> to vector<16xf32>
    %11 = vector.shape_cast %10 : vector<16xf32> to vector<16x1xf32>
    %12 = vector.broadcast %11 : vector<16x1xf32> to vector<16x128xf32>
    %13 = arith.subf %0, %12 : vector<16x128xf32>
    %14 = math.exp %13 : vector<16x128xf32>
    %cst_9 = arith.constant dense<0.000000e+00> : vector<16xf32>
    %15 = vector.multi_reduction <add>, %14, %cst_9 [1] : vector<16x128xf32> to vector<16xf32>
    %16 = vector.shape_cast %15 : vector<16xf32> to vector<16x1xf32>
    %17 = math.log %16 : vector<16x1xf32>
    %18 = arith.mulf %9, %13 : vector<16x128xf32>
    %cst_10 = arith.constant dense<0.000000e+00> : vector<16xf32>
    %19 = vector.multi_reduction <add>, %18, %cst_10 [1] : vector<16x128xf32> to vector<16xf32>
    %20 = vector.shape_cast %19 : vector<16xf32> to vector<16x1xf32>
    %21 = arith.subf %17, %20 : vector<16x1xf32>
    %cst_11 = arith.constant dense<0.000000e+00> : vector<16x128xf32>
    %22 = tpu.matmul %14, %4, %cst_11 {dimension_numbers = #tpu.dot_dimension_numbers<[1], [0], [0], [1], [0, 0, 1, 1], [], []>} : vector<16x128xf32>, vector<128x128xf32>, vector<16x128xf32> -> vector<16x128xf32>
    %23 = arith.mulf %9, %22 : vector<16x128xf32>
    %cst_12 = arith.constant dense<0.000000e+00> : vector<16xf32>
    %24 = vector.multi_reduction <add>, %23, %cst_12 [1] : vector<16x128xf32> to vector<16xf32>
    %25 = vector.shape_cast %24 : vector<16xf32> to vector<16x1xf32>
    %26 = math.log %25 : vector<16x1xf32>
    %27 = arith.subf %17, %26 : vector<16x1xf32>
    %28 = arith.mulf %21, %2 : vector<16x1xf32>
    %cst_13 = arith.constant 0.000000e+00 : f32
    %29 = vector.broadcast %cst_13 : f32 to vector<16x1xf32>
    %30 = arith.cmpf ogt, %3, %29 : vector<16x1xf32>
    %31 = arith.mulf %27, %3 : vector<16x1xf32>
    %cst_14 = arith.constant 0.000000e+00 : f32
    %32 = vector.broadcast %cst_14 : f32 to vector<16x1xf32>
    %33 = arith.select %30, %31, %32 : vector<16x1xi1>, vector<16x1xf32>
    %34 = arith.addf %28, %33 : vector<16x1xf32>
    %35 = vector.shape_cast %34 : vector<16x1xf32> to vector<1x16x1xf32>
    %cst_15 = arith.constant dense<0.000000e+00> : vector<1xf32>
    %36 = vector.multi_reduction <add>, %35, %cst_15 [1, 2] : vector<1x16x1xf32> to vector<1xf32>
    %37 = vector.shape_cast %36 : vector<1xf32> to vector<1x1x1xf32>
    %38 = vector.extract %37[0, 0, 0] : f32 from vector<1x1x1xf32>
    %39 = vector.broadcast %38 : f32 to vector<1x128xf32>
    %c0_16 = arith.constant 0 : index
    %c0_17 = arith.constant 0 : index
    %40 = vector.load %arg6[%c0_16, %c0_17] : memref<1x128xf32, #tpu.memory_space<vmem>>, vector<1x128xf32>
    tpu.vector_store %arg6[%c0_16, %c0_17], %39 {strides = array<i32>} : memref<1x128xf32, #tpu.memory_space<vmem>>, vector<1x128xf32>,
    return
  }
  func.func @transform_0(%arg0: i32) -> (i32, i32) {
    %c0_i32 = arith.constant 0 : i32
    %c0_i32_0 = arith.constant 0 : i32
    return %arg0, %c0_i32 : i32, i32
  }
  func.func @transform_1(%arg0: i32) -> (i32, i32) {
    %c0_i32 = arith.constant 0 : i32
    %c0_i32_0 = arith.constant 0 : i32
    return %arg0, %c0_i32 : i32, i32
  }
  func.func @transform_2(%arg0: i32) -> (i32, i32) {
    %c0_i32 = arith.constant 0 : i32
    %c0_i32_0 = arith.constant 0 : i32
    return %arg0, %c0_i32 : i32, i32
  }
  func.func @transform_3(%arg0: i32) -> (i32, i32) {
    %c0_i32 = arith.constant 0 : i32
    %c0_i32_0 = arith.constant 0 : i32
    return %arg0, %c0_i32 : i32, i32
  }
  func.func @transform_4(%arg0: i32) -> (i32, i32) {
    %c0_i32 = arith.constant 0 : i32
    %c0_i32_0 = arith.constant 0 : i32
    %c0_i32_1 = arith.constant 0 : i32
    return %c0_i32, %c0_i32_0 : i32, i32
  }
  func.func @transform_5(%arg0: i32) -> (i32, i32) {
    %c0_i32 = arith.constant 0 : i32
    %c0_i32_0 = arith.constant 0 : i32
    return %c0_i32, %arg0 : i32, i32
  }
}

</mosaic_0001>

<llo_original>
// kernel: tpu_custom_call.1
$region0: #{tpu_custom_call.1}
  #allocation0 [shape = 'u32[]', space=smem, size = 0x4, offset = 0x4, fixed_abs, tag = 'smem constant byte address 0x4 - core index']
  #allocation1 [shape = 'u32[144,128]{1,0:T(1,128)}', space=vmem, size = 0x12000, scoped, tag = 'internal scratch']
  %s0 = inlined_call_operand.vmem [shape: f32[32,128], index: 0, kind: input, shape index: {}]
  %s1 = inlined_call_operand.vmem [shape: s32[32,1], index: 1, kind: input, shape index: {}]
  %s2 = inlined_call_operand.vmem [shape: f32[32,1], index: 2, kind: input, shape index: {}]
  %s3 = inlined_call_operand.vmem [shape: f32[32,1], index: 3, kind: input, shape index: {}]
  %s4 = inlined_call_operand.hbm [shape: f32[128,128], index: 4, kind: input, shape index: {}]
  %s5 = inlined_call_operand.hbm [shape: f32[1,256], index: 5, kind: output, shape index: {}]
  %s6 = sld [smem:[#allocation0]]
  $region57: #{tpu_custom_call.1} parent=0
    _
  %s8 = ssub.s32 1, %s6
  %s9 = scalar_select 0, %s8, %s6
  $region1: #{tpu_custom_call.1} parent=0
    #allocation2 [shape = 'u8[65536]{0}', space=vmem, size = 0x10000, scoped, tag = 'input window, operand 4, single buffered']
    #allocation3 [shape = 's32[2]{0}', space=sflag, size = 0x8, scoped, tag = 'scoped memory for tpu_custom_call.1']
    #allocation4 [shape = 's32[2]{0}', space=sflag, size = 0x8, scoped, tag = 'scoped memory for tpu_custom_call.1']
    #allocation5 [shape = 'u8[1024]{0}', space=vmem, size = 0x400, scoped, tag = 'output window, operand 0']
    %10 = vsyncpa [#allocation3], 0
    %11 = vsyncpa [#allocation4], 0
    %s12 = scalar_lea.sflag [#allocation4], 1
    %13 = vsyncpa %s12, 0
    loop: start=0, step=1, limit=4
    $region2: #{tpu_custom_call.1} parent=1 // loop_pre_header
      _
    $region3: #{tpu_custom_call.1} parent=1 // loop_header
      %s15 = sphi 0, %s19
      %p16 = scmp.ge.s32.totalorder %s15, 4
      %s25 = sphi 0, %s27
      %s28 = sphi 0, %s25
      %s29 = sphi 0, %s28
      %s45 = sphi 0, %s29
      %s51 = sphi 0, %s53
      %s54 = sphi 0, %s51
      %s55 = sphi 0, %s54
      %s71 = sphi 0, %s55
      %s77 = sphi 0, %s79
      %s80 = sphi 0, %s77
      %s81 = sphi 0, %s80
      %s97 = sphi 0, %s81
      %s103 = sphi 0, %s105
      %s106 = sphi 0, %s103
      %s107 = sphi 0, %s106
      %s123 = sphi 0, %s107
      %s127 = sphi 0, %s127
      %s129 = sphi 0, %s127
      %s130 = sphi 0, %s129
      %s144 = sphi 0, %s130
      %s150 = sphi 0, %s152
      %s153 = sphi 0, %s150
      %s154 = sphi 0, %s153
      %s170 = sphi 0, %s154
    $region4: #{tpu_custom_call.1} parent=1 // loop_header_branch
      %18 = sbr.rel (%p16) target = $region8
    $region5: #{tpu_custom_call.1} parent=1 // loop_body
      %s20 = ssub.s32 %s15, 1
      %s21 = ssub.s32 %s15, 2
      %s22 = sadd.s32 %s15, 1
      %s23 = ssub.s32 %s15, %s22
      %p24 = scmp.eq.s32.totalorder %s23, 0
      %s26 = sadd.s32 %s25, 1
      %s27 = scalar_select %p24, %s25, %s26
      %p30 = pneg %p24
      %p31 = scmp.eq.s32.totalorder %s15, 1
      %p32 = por %p30, %p31
      %p33 = scmp.ne.s32.totalorder %s25, %s28
      %p34 = scmp.eq.s32.totalorder %s15, 0
      %p35 = por %p33, %p34
      %p36 = scmp.ne.s32.totalorder %s25, %s28
      %p37 = scmp.eq.s32.totalorder %s20, 1
      %p38 = por %p36, %p37
      %p39 = scmp.ne.s32.totalorder %s28, %s29
      %p40 = scmp.eq.s32.totalorder %s20, 0
      %p41 = por %p39, %p40
      %p42 = scmp.ne.s32.totalorder %s28, %s29
      %p43 = scmp.eq.s32.totalorder %s21, 1
      %p44 = por %p42, %p43
      %p46 = scmp.ne.s32.totalorder %s29, %s45
      %p47 = scmp.eq.s32.totalorder %s21, 0
      %p48 = por %p46, %p47
      %s49 = ssub.s32 %s15, %s22
      %p50 = scmp.eq.s32.totalorder %s49, 0
      %s52 = sadd.s32 %s51, 1
      %s53 = scalar_select %p50, %s51, %s52
      %p56 = pneg %p50
      %p57 = scmp.eq.s32.totalorder %s15, 1
      %p58 = por %p56, %p57
      %p59 = scmp.ne.s32.totalorder %s51, %s54
      %p60 = scmp.eq.s32.totalorder %s15, 0
      %p61 = por %p59, %p60
      %p62 = scmp.ne.s32.totalorder %s51, %s54
      %p63 = scmp.eq.s32.totalorder %s20, 1
      %p64 = por %p62, %p63
      %p65 = scmp.ne.s32.totalorder %s54, %s55
      %p66 = scmp.eq.s32.totalorder %s20, 0
      %p67 = por %p65, %p66
      %p68 = scmp.ne.s32.totalorder %s54, %s55
      %p69 = scmp.eq.s32.totalorder %s21, 1
      %p70 = por %p68, %p69
      %p72 = scmp.ne.s32.totalorder %s55, %s71
      %p73 = scmp.eq.s32.totalorder %s21, 0
      %p74 = por %p72, %p73
      %s75 = ssub.s32 %s15, %s22
      %p76 = scmp.eq.s32.totalorder %s75, 0
      %s78 = sadd.s32 %s77, 1
      %s79 = scalar_select %p76, %s77, %s78
      %p82 = pneg %p76
      %p83 = scmp.eq.s32.totalorder %s15, 1
      %p84 = por %p82, %p83
      %p85 = scmp.ne.s32.totalorder %s77, %s80
      %p86 = scmp.eq.s32.totalorder %s15, 0
      %p87 = por %p85, %p86
      %p88 = scmp.ne.s32.totalorder %s77, %s80
      %p89 = scmp.eq.s32.totalorder %s20, 1
      %p90 = por %p88, %p89
      %p91 = scmp.ne.s32.totalorder %s80, %s81
      %p92 = scmp.eq.s32.totalorder %s20, 0
      %p93 = por %p91, %p92
      %p94 = scmp.ne.s32.totalorder %s80, %s81
      %p95 = scmp.eq.s32.totalorder %s21, 1
      %p96 = por %p94, %p95
      %p98 = scmp.ne.s32.totalorder %s81, %s97
      %p99 = scmp.eq.s32.totalorder %s21, 0
      %p100 = por %p98, %p99
      %s101 = ssub.s32 %s15, %s22
      %p102 = scmp.eq.s32.totalorder %s101, 0
      %s104 = sadd.s32 %s103, 1
      %s105 = scalar_select %p102, %s103, %s104
      %p108 = pneg %p102
      %p109 = scmp.eq.s32.totalorder %s15, 1
      %p110 = por %p108, %p109
      %p111 = scmp.ne.s32.totalorder %s103, %s106
      %p112 = scmp.eq.s32.totalorder %s15, 0
      %p113 = por %p111, %p112
      %p114 = scmp.ne.s32.totalorder %s103, %s106
      %p115 = scmp.eq.s32.totalorder %s20, 1
      %p116 = por %p114, %p115
      %p117 = scmp.ne.s32.totalorder %s106, %s107
      %p118 = scmp.eq.s32.totalorder %s20, 0
      %p119 = por %p117, %p118
      %p120 = scmp.ne.s32.totalorder %s106, %s107
      %p121 = scmp.eq.s32.totalorder %s21, 1
      %p122 = por %p120, %p121
      %p124 = scmp.ne.s32.totalorder %s107, %s123
      %p125 = scmp.eq.s32.totalorder %s21, 0
      %p126 = por %p124, %p125
      %s128 = sadd.s32 %s127, 1
      %p131 = scmp.eq.s32.totalorder %s15, 1
      %p132 = scmp.ne.s32.totalorder %s127, %s129
      %p133 = scmp.eq.s32.totalorder %s15, 0
      %p134 = por %p132, %p133
      %p135 = scmp.ne.s32.totalorder %s127, %s129
      %p136 = scmp.eq.s32.totalorder %s20, 1
      %p137 = por %p135, %p136
      %p138 = scmp.ne.s32.totalorder %s129, %s130
      %p139 = scmp.eq.s32.totalorder %s20, 0
      %p140 = por %p138, %p139
      %p141 = scmp.ne.s32.totalorder %s129, %s130
      %p142 = scmp.eq.s32.totalorder %s21, 1
      %p143 = por %p141, %p142
      %p145 = scmp.ne.s32.totalorder %s130, %s144
      %p146 = scmp.eq.s32.totalorder %s21, 0
      %p147 = por %p145, %p146
      %s148 = ssub.s32 %s15, %s22
      %p149 = scmp.eq.s32.totalorder %s148, 0
      %s151 = sadd.s32 %s150, 1
      %s152 = scalar_select %p149, %s150, %s151
      %p155 = pneg %p149
      %p156 = scmp.eq.s32.totalorder %s15, 1
      %p157 = por %p155, %p156
      %p158 = scmp.ne.s32.totalorder %s150, %s153
      %p159 = scmp.eq.s32.totalorder %s15, 0
      %p160 = por %p158, %p159
      %p161 = scmp.ne.s32.totalorder %s150, %s153
      %p162 = scmp.eq.s32.totalorder %s20, 1
      %p163 = por %p161, %p162
      %p164 = scmp.ne.s32.totalorder %s153, %s154
      %p165 = scmp.eq.s32.totalorder %s20, 0
      %p166 = por %p164, %p165
      %p167 = scmp.ne.s32.totalorder %s153, %s154
      %p168 = scmp.eq.s32.totalorder %s21, 1
      %p169 = por %p167, %p168
      %p171 = scmp.ne.s32.totalorder %s154, %s170
      %p172 = scmp.eq.s32.totalorder %s21, 0
      %p173 = por %p171, %p172
      %p174 = scmp.le.s32.totalorder 1, %s15
      %p175 = scmp.lt.s32.totalorder %s15, 3
      %p176 = pnand %p174, %p175
      %p177 = pneg %p176
      // Predicated region
      $region9: #{tpu_custom_call.1} parent=5 // pred_check
        _
      $region10: #{tpu_custom_call.1} parent=5 // pred_check_branch
        %179 = sbr.rel (%p176) target = $region12
      $region11: #{tpu_custom_call.1} parent=5 // pred_region
        %s180 = ssub.s32 %s15, 1
        // Predicated region
        $region13: #{tpu_custom_call.1} parent=11 // pred_check
          %p181 = pneg %p140
        $region14: #{tpu_custom_call.1} parent=11 // pred_check_branch
          %183 = sbr.rel (%p181) target = $region16
        $region15: #{tpu_custom_call.1} parent=11 // pred_region
          %s185 = ssub.s32 2048, 2048
          %186 = vsyncadd [#allocation3], %s185
          %s187 = sshll.u32 [#allocation2], 4
          %s188 = int_to_ptr.vmem [resolvable:$true] %s187
          %193 = dma.hbm_to_vmem [thread:$0]  %s4, 2048, %s188, [#allocation3], 128, 128, 8
        $region16: #{tpu_custom_call.1} parent=11 // pred_fallthru
          _
      $region12: #{tpu_custom_call.1} parent=5 // pred_fallthru
        _
      %p194 = scmp.lt.s32.totalorder %s15, 2
      // Predicated region
      $region17: #{tpu_custom_call.1} parent=5 // pred_check
        %p195 = pneg %p194
      $region18: #{tpu_custom_call.1} parent=5 // pred_check_branch
        %197 = sbr.rel (%p195) target = $region20
      $region19: #{tpu_custom_call.1} parent=5 // pred_region
        // Predicated region
        $region21: #{tpu_custom_call.1} parent=19 // pred_check
          %p198 = pneg %p35
        $region22: #{tpu_custom_call.1} parent=19 // pred_check_branch
          %200 = sbr.rel (%p198) target = $region24
        $region23: #{tpu_custom_call.1} parent=19 // pred_region
          %s201 = smul.u32 2, %s15
          %p202 = scmp.lt.s32.totalorder %s201, 3
          %s203 = scalar_select %p202, %s201, 3
          %s204 = smul.addr %s203, 8
          %s205 = scalar_lea.vmem %s0, %s204
          %s206 = smul.u32 2, %s15
        $region24: #{tpu_custom_call.1} parent=19 // pred_fallthru
          _
        // Predicated region
        $region25: #{tpu_custom_call.1} parent=19 // pred_check
          %p207 = pneg %p61
        $region26: #{tpu_custom_call.1} parent=19 // pred_check_branch
          %209 = sbr.rel (%p207) target = $region28
        $region27: #{tpu_custom_call.1} parent=19 // pred_region
          %s210 = smul.u32 2, %s15
          %p211 = scmp.lt.s32.totalorder %s210, 3
          %s212 = scalar_select %p211, %s210, 3
          %s213 = smul.addr %s212, 8
          %s214 = scalar_lea.vmem %s1, %s213
          %s215 = smul.u32 2, %s15
        $region28: #{tpu_custom_call.1} parent=19 // pred_fallthru
          _
        // Predicated region
        $region29: #{tpu_custom_call.1} parent=19 // pred_check
          %p216 = pneg %p87
        $region30: #{tpu_custom_call.1} parent=19 // pred_check_branch
          %218 = sbr.rel (%p216) target = $region32
        $region31: #{tpu_custom_call.1} parent=19 // pred_region
          %s219 = smul.u32 2, %s15
          %p220 = scmp.lt.s32.totalorder %s219, 3
          %s221 = scalar_select %p220, %s219, 3
          %s222 = smul.addr %s221, 8
          %s223 = scalar_lea.vmem %s2, %s222
          %s224 = smul.u32 2, %s15
        $region32: #{tpu_custom_call.1} parent=19 // pred_fallthru
          _
        // Predicated region
        $region33: #{tpu_custom_call.1} parent=19 // pred_check
          %p225 = pneg %p113
        $region34: #{tpu_custom_call.1} parent=19 // pred_check_branch
          %227 = sbr.rel (%p225) target = $region36
        $region35: #{tpu_custom_call.1} parent=19 // pred_region
          %s228 = smul.u32 2, %s15
          %p229 = scmp.lt.s32.totalorder %s228, 3
          %s230 = scalar_select %p229, %s228, 3
          %s231 = smul.addr %s230, 8
          %s232 = scalar_lea.vmem %s3, %s231
          %s233 = smul.u32 2, %s15
        $region36: #{tpu_custom_call.1} parent=19 // pred_fallthru
          _
      $region20: #{tpu_custom_call.1} parent=5 // pred_fallthru
        _
      %p234 = scmp.le.s32.totalorder 1, %s15
      %p235 = scmp.lt.s32.totalorder %s15, 3
      %p236 = pnand %p234, %p235
      %p237 = pneg %p236
      // Predicated region
      $region37: #{tpu_custom_call.1} parent=5 // pred_check
        _
      $region38: #{tpu_custom_call.1} parent=5 // pred_check_branch
        %239 = sbr.rel (%p236) target = $region40
      $region39: #{tpu_custom_call.1} parent=5 // pred_region
        %s240 = ssub.s32 %s15, 1
        // Predicated region
        $region41: #{tpu_custom_call.1} parent=39 // pred_check
          %p241 = pneg %p140
        $region42: #{tpu_custom_call.1} parent=39 // pred_check_branch
          %243 = sbr.rel (%p241) target = $region44
        $region43: #{tpu_custom_call.1} parent=39 // pred_region
          %244 = dma.done [#allocation3], 2048
        $region44: #{tpu_custom_call.1} parent=39 // pred_fallthru
          _
        %s245 = smul.u32 2, %s20
        %p246 = scmp.lt.s32.totalorder %s245, 3
        %s247 = scalar_select %p246, %s245, 3
        %s248 = smul.addr %s247, 8
        %s249 = scalar_lea.vmem %s0, %s248
        %p250 = pneg %p41
        %p251 = pneg %p38
        %s252 = smul.u32 2, %s20
        %p253 = scmp.lt.s32.totalorder %s252, 3
        %s254 = scalar_select %p253, %s252, 3
        %s255 = smul.addr %s254, 8
        %s256 = scalar_lea.vmem %s1, %s255
        %p257 = pneg %p67
        %p258 = pneg %p64
        %s259 = smul.u32 2, %s20
        %p260 = scmp.lt.s32.totalorder %s259, 3
        %s261 = scalar_select %p260, %s259, 3
        %s262 = smul.addr %s261, 8
        %s263 = scalar_lea.vmem %s2, %s262
        %p264 = pneg %p93
        %p265 = pneg %p90
        %s266 = smul.u32 2, %s20
        %p267 = scmp.lt.s32.totalorder %s266, 3
        %s268 = scalar_select %p267, %s266, 3
        %s269 = smul.addr %s268, 8
        %s270 = scalar_lea.vmem %s3, %s269
        %p271 = pneg %p119
        %p272 = pneg %p116
        %p273 = pneg %p140
        %p274 = pneg %p137
        %p275 = pneg %p166
        %p276 = pneg %p163
        %s277 = sand.u32 %s153, 1
        %s278 = scalar_lea.sflag [#allocation4], %s277
        %s279 = sand.u32 %s153, 1
        %s280 = scalar_lea.vmem [#allocation5], %s279
        %s281 = smul.u32 2, %s20
        %p282 = scmp.lt.s32.totalorder %s281, 3
        %s283 = scalar_select %p282, %s281, 3
        %s284 = smul.addr %s283, 8
        %s285 = scalar_lea.vmem %s0, %s284
        %s286 = smul.u32 2, %s20
        %s287 = smul.u32 2, %s20
        %p288 = scmp.lt.s32.totalorder %s287, 3
        %s289 = scalar_select %p288, %s287, 3
        %s290 = smul.addr %s289, 8
        %s291 = scalar_lea.vmem %s1, %s290
        %s292 = smul.u32 2, %s20
        %s293 = smul.u32 2, %s20
        %p294 = scmp.lt.s32.totalorder %s293, 3
        %s295 = scalar_select %p294, %s293, 3
        %s296 = smul.addr %s295, 8
        %s297 = scalar_lea.vmem %s2, %s296
        %s298 = smul.u32 2, %s20
        %s299 = smul.u32 2, %s20
        %p300 = scmp.lt.s32.totalorder %s299, 3
        %s301 = scalar_select %p300, %s299, 3
        %s302 = smul.addr %s301, 8
        %s303 = scalar_lea.vmem %s3, %s302
        %s304 = smul.u32 2, %s20
        %v305 = vld [vmem:[%s285] sm:$0xff]
        %v306 = vld [vmem:[%s285 + $0x8] sm:$0xff]
        %v307 = vld [vmem:[%s291] sm:$0xff]
        %v308 = vld [vmem:[%s291 + $0x8] sm:$0xff]
        %v309 = vld [vmem:[%s297] sm:$0xff]
        %v310 = vld [vmem:[%s297 + $0x8] sm:$0xff]
        %v311 = vld [vmem:[%s303] sm:$0xff]
        %v312 = vld [vmem:[%s303 + $0x8] sm:$0xff]
        %v313 = vld [vmem:[#allocation2] sm:$0xff]
        %v314 = vld [vmem:[#allocation2 + $0x8] sm:$0xff]
        %v315 = vld [vmem:[#allocation2 + $0x10] sm:$0xff]
        %v316 = vld [vmem:[#allocation2 + $0x18] sm:$0xff]
        %v317 = vld [vmem:[#allocation2 + $0x20] sm:$0xff]
        %v318 = vld [vmem:[#allocation2 + $0x28] sm:$0xff]
        %v319 = vld [vmem:[#allocation2 + $0x30] sm:$0xff]
        %v320 = vld [vmem:[#allocation2 + $0x38] sm:$0xff]
        %v321 = vld [vmem:[#allocation2 + $0x40] sm:$0xff]
        %v322 = vld [vmem:[#allocation2 + $0x48] sm:$0xff]
        %v323 = vld [vmem:[#allocation2 + $0x50] sm:$0xff]
        %v324 = vld [vmem:[#allocation2 + $0x58] sm:$0xff]
        %v325 = vld [vmem:[#allocation2 + $0x60] sm:$0xff]
        %v326 = vld [vmem:[#allocation2 + $0x68] sm:$0xff]
        %v327 = vld [vmem:[#allocation2 + $0x70] sm:$0xff]
        %v328 = vld [vmem:[#allocation2 + $0x78] sm:$0xff]
        %v329 = vlaneseq
        %v330 = vand.u32 %v329, 127
        %331 = vset.pattern.permute.xlu0 0
        %332 = vperm.xlu0 %331, %v307
        %v333 = vpop.permute.xlu0 %332
        %334 = vset.pattern.permute.xlu0 0
        %335 = vperm.xlu0 %334, %v308
        %v336 = vpop.permute.xlu0 %335
        %vm337 = vcmp.eq.s32.totalorder %v330, %v333
        %vm338 = vcmp.eq.s32.totalorder %v330, %v336
        %v339 = vsel %vm337, 1, 0
        %v340 = vsel %vm338, 1, 0
        %v341 = vcvt.s32.f32 %v339
        %v342 = vcvt.s32.f32 %v340
        %343 = vmax.xlane.f32.xlu0 %v305
        %v344 = vpop.xlane.xlu0 %343
        %345 = vmax.xlane.f32.xlu0 %v306
        %v346 = vpop.xlane.xlu0 %345
        %v347 = vsub.f32 %v305, %v344
        %v348 = vsub.f32 %v306, %v346
        %v349 = vmul.f32 %v347, 1.442695
        %v350 = vpow.pop %v349
        %v351 = vmul.f32 %v348, 1.442695
        %v352 = vpow.pop %v351
        %353 = vadd.xlane.f32.xlu0 %v350
        %v354 = vpop.xlane.xlu0 %353
        %355 = vadd.xlane.f32.xlu0 %v352
        %v356 = vpop.xlane.xlu0 %355
        %v357 = vlog2.pop %v354
        %v358 = vmul.f32 %v357, 0.6931472
        %v359 = vlog2.pop %v356
        %v360 = vmul.f32 %v359, 0.6931472
        %v361 = vmul.f32 %v341, %v347
        %v362 = vmul.f32 %v342, %v348
        %363 = vadd.xlane.f32.xlu0 %v361
        %v364 = vpop.xlane.xlu0 %363
        %365 = vadd.xlane.f32.xlu0 %v362
        %v366 = vpop.xlane.xlu0 %365
        %v367 = vsub.f32 %v358, %v364
        %v368 = vsub.f32 %v360, %v366
        %369 = vmatprep.subr.mxu0 0.0
        %370 = vmatpush1.msra.mxu0 %v313
        %371 = vmatprep.subr.mxu0 0.0
        %372 = vmatpush1.msra.mxu0 %v314
        %373 = vmatprep.subr.mxu0 0.0
        %374 = vmatpush1.msra.mxu0 %v315
        %375 = vmatprep.subr.mxu0 0.0
        %376 = vmatpush1.msra.mxu0 %v316
        %377 = vmatprep.subr.mxu0 0.0
        %378 = vmatpush1.msra.mxu0 %v317
        %379 = vmatprep.subr.mxu0 0.0
        %380 = vmatpush1.msra.mxu0 %v318
        %381 = vmatprep.subr.mxu0 0.0
        %382 = vmatpush1.msra.mxu0 %v319
        %383 = vmatprep.subr.mxu0 0.0
        %384 = vmatpush1.msra.mxu0 %v320
        %385 = vmatprep.subr.mxu0 0.0
        %386 = vmatpush1.msra.mxu0 %v321
        %387 = vmatprep.subr.mxu0 0.0
        %388 = vmatpush1.msra.mxu0 %v322
        %389 = vmatprep.subr.mxu0 0.0
        %390 = vmatpush1.msra.mxu0 %v323
        %391 = vmatprep.subr.mxu0 0.0
        %392 = vmatpush1.msra.mxu0 %v324
        %393 = vmatprep.subr.mxu0 0.0
        %394 = vmatpush1.msra.mxu0 %v325
        %395 = vmatprep.subr.mxu0 0.0
        %396 = vmatpush1.msra.mxu0 %v326
        %397 = vmatprep.subr.mxu0 0.0
        %398 = vmatpush1.msra.mxu0 %v327
        %399 = vmatprep.subr.mxu0 0.0
        %400 = vmatpush1.msra.mxu0 %v328
        %401 = vmatprep.subr.mxu0 0.0
        %402 = vmatpush1.msra.mxu0 0.0
        %403 = vmatprep.subr.mxu0 0.0
        %404 = vmatpush1.msra.mxu0 0.0
        %405 = vmatprep.subr.mxu0 0.0
        %406 = vmatpush1.msra.mxu0 0.0
        %407 = vmatprep.subr.mxu0 0.0
        %408 = vmatpush1.msra.mxu0 0.0
        %409 = vmatprep.subr.mxu0 0.0
        %410 = vmatpush1.msra.mxu0 0.0
        %411 = vmatprep.subr.mxu0 0.0
        %412 = vmatpush1.msra.mxu0 0.0
        %413 = vmatprep.subr.mxu0 0.0
        %414 = vmatpush1.msra.mxu0 0.0
        %415 = vmatprep.subr.mxu0 0.0
        %416 = vmatpush1.msra.mxu0 0.0
        %417 = vmatprep.subr.mxu0 0.0
        %418 = vmatpush1.msra.mxu0 0.0
        %419 = vmatprep.subr.mxu0 0.0
        %420 = vmatpush1.msra.mxu0 0.0
        %421 = vmatprep.subr.mxu0 0.0
        %422 = vmatpush1.msra.mxu0 0.0
        %423 = vmatprep.subr.mxu0 0.0
        %424 = vmatpush1.msra.mxu0 0.0
        %425 = vmatprep.subr.mxu0 0.0
        %426 = vmatpush1.msra.mxu0 0.0
        %427 = vmatprep.subr.mxu0 0.0
        %428 = vmatpush1.msra.mxu0 0.0
        %429 = vmatprep.subr.mxu0 0.0
        %430 = vmatpush1.msra.mxu0 0.0
        %431 = vmatprep.subr.mxu0 0.0
        %432 = vmatpush1.msra.mxu0 0.0
        %433 = vmatprep.mubr.f32.mxu0 0.0
        %434 = vmatmul.mubr.f32.gmra.mrb[0].mxu0 %v350
        %v435 = vpop.f32.mrb[0].mxu0
        %v436 = vadd.f32 0.0, %v435
        %v437 = vpop.f32.mrb[0].mxu0
        %438 = vmatprep.mubr.f32.mxu0 0.0
        %439 = vmatmul.mubr.f32.gmra.mrb[0].mxu0 %v352
        %v440 = vpop.f32.mrb[0].mxu0
        %v441 = vadd.f32 0.0, %v440
        %v442 = vpop.f32.mrb[0].mxu0
        %443 = vdwg.mxu0
        %v444 = vmul.f32 %v341, %v436
        %v445 = vmul.f32 %v342, %v441
        %446 = vadd.xlane.f32.xlu0 %v444
        %v447 = vpop.xlane.xlu0 %446
        %448 = vadd.xlane.f32.xlu0 %v445
        %v449 = vpop.xlane.xlu0 %448
        %v450 = vlog2.pop %v447
        %v451 = vmul.f32 %v450, 0.6931472
        %v452 = vlog2.pop %v449
        %v453 = vmul.f32 %v452, 0.6931472
        %v454 = vsub.f32 %v358, %v451
        %v455 = vsub.f32 %v360, %v453
        %v456 = vmul.f32 %v367, %v309
        %v457 = vmul.f32 %v368, %v310
        %vm458 = vcmp.gt.f32.partialorder %v311, 0.0
        %vm459 = vcmp.gt.f32.partialorder %v312, 0.0
        %v460 = vmul.f32 %v454, %v311
        %v461 = vmul.f32 %v455, %v312
        %v462 = vsel %vm458, %v460, 0.0
        %v463 = vsel %vm459, %v461, 0.0
        %v464 = vadd.f32 %v456, %v462
        %v465 = vadd.f32 %v457, %v463
        %vm466 = vcmask 7168
        %v467 = vsel %vm466, %v464, 0.0
        %v468 = vsel %vm466, %v465, 0.0
        %v469 = vadd.f32 %v467, %v468
        %470 = vadd.xlane.f32.xlu0 %v469
        %v471 = vpop.xlane.xlu0 %470
        %v472 = vrot.slane %v471, 4
        %v473 = vadd.f32 %v471, %v472
        %v474 = vrot.slane %v473, 2
        %v475 = vadd.f32 %v473, %v474
        %v476 = vrot.slane %v475, 1
        %v477 = vadd.f32 %v475, %v476
        %s478 = vtos %v477
        %v479 = vstv %s478
        %480 = vst [vmem:[%s280] sm:$0x1] %v479
        %s481 = sand.u32 %s153, 1
        %s482 = scalar_lea.sflag [#allocation4], %s481
        %s483 = sand.u32 %s153, 1
        %s484 = scalar_lea.vmem [#allocation5], %s483
        // Predicated region
        $region45: #{tpu_custom_call.1} parent=39 // pred_check
          %p485 = pneg %p163
        $region46: #{tpu_custom_call.1} parent=39 // pred_check_branch
          %487 = sbr.rel (%p485) target = $region48
        $region47: #{tpu_custom_call.1} parent=39 // pred_region
          %s489 = ssub.s32 16, 16
          %490 = vsyncadd %s482, %s489
          %s491 = smul.addr %s20, 16
          %s492 = scalar_lea.hbm %s5, %s491
          %s494 = sshll.u32 %s484, 4
          %s495 = int_to_ptr.vmem [resolvable:$true] %s494
          %497 = dma.vmem_to_hbm [thread:$0]  %s495, 16, %s492, %s482
        $region48: #{tpu_custom_call.1} parent=39 // pred_fallthru
          _
      $region40: #{tpu_custom_call.1} parent=5 // pred_fallthru
        _
      %p498 = scmp.le.s32.totalorder 2, %s15
      // Predicated region
      $region49: #{tpu_custom_call.1} parent=5 // pred_check
        %p499 = pneg %p498
      $region50: #{tpu_custom_call.1} parent=5 // pred_check_branch
        %501 = sbr.rel (%p499) target = $region52
      $region51: #{tpu_custom_call.1} parent=5 // pred_region
        %s502 = ssub.s32 %s15, 2
        // Predicated region
        $region53: #{tpu_custom_call.1} parent=51 // pred_check
          %p503 = pneg %p169
        $region54: #{tpu_custom_call.1} parent=51 // pred_check_branch
          %505 = sbr.rel (%p503) target = $region56
        $region55: #{tpu_custom_call.1} parent=51 // pred_region
          %s506 = sand.u32 %s154, 1
          %s507 = scalar_lea.sflag [#allocation4], %s506
          %s508 = sand.u32 %s154, 1
          %s509 = scalar_lea.vmem [#allocation5], %s508
          %510 = dma.done %s507, 16
        $region56: #{tpu_custom_call.1} parent=51 // pred_fallthru
          _
      $region52: #{tpu_custom_call.1} parent=5 // pred_fallthru
        _
    $region6: #{tpu_custom_call.1} parent=1 // loop_footer
      %s19 = sadd.s32 1, %s15
    $region7: #{tpu_custom_call.1} parent=1 // loop_footer_branch
      %14 = sbr.rel target = $region3
    $region8: #{tpu_custom_call.1} parent=1 // loop_exit
      _
    %511 = vsyncpa [#allocation3], 1
    %s512 = scalar_lea.sflag [#allocation3], 1
    %513 = vsyncpa %s512, 1
    %514 = vsyncpa [#allocation4], 1
    %s515 = scalar_lea.sflag [#allocation4], 1
    %516 = vsyncpa %s515, 1

</llo_original>
